<compile_context>
chip_gen: v7x
topology: tpu7x:2x2x1
jax: 0.10.0
libtpu: 0.0.40
codegen_flags: <defaults>
</compile_context>

<pallas_src>
import functools

import jax
import jax.numpy as jnp
from jax.experimental import pallas as pl
from jax.experimental.pallas import tpu as pltpu

LANE = 128           # vreg lane width
BF16_SUBLANE = 16    # sublane quantum for bf16 operands


def _round_up(n, m):
    return ((n + m - 1) // m) * m


def _two_tensorcores_per_chip():
    """Best-effort detection of v7x-style chips (2 TensorCores per chip)."""
    try:
        kind = jax.devices()[0].device_kind.lower()
    except Exception:
        return False
    return "v7" in kind


def _choose_tm(batch, tm):
    """Batch-tile choice per the perf review:
       * single tile up to MXU-M=256 on 1-TC chips (v5e/v6e),
       * keep >= 2 batch tiles on 2-TC chips (v7x) until B >= 512,
       * tm=256 once the batch is large enough either way."""
    bp8 = _round_up(max(batch, 1), 8)
    if tm is not None:
        return max(8, min(_round_up(tm, 8), bp8))
    if bp8 >= 512:
        return 256
    if bp8 >= 16 and _two_tensorcores_per_chip():
        return min(256, _round_up(pl.cdiv(bp8, 2), 8))
    return min(256, bp8)


def make_dqn_kernel(num_linear):
    """Fused MLP: (num_linear - 1) x (Linear -> ReLU) + final Linear.

    All layers run inside one grid step; hidden activations never leave VMEM.
    Matmuls accumulate in f32 (preferred_element_type); bias-add / ReLU stay in
    f32, then the activation is cast back to bf16 for the next MXU matmul.
    """
    def kernel(*refs):
        x_ref = refs[0]
        out_ref = refs[-1]
        h = x_ref[...]                              # (TM, K0p) bf16
        for li in range(num_linear):                # statically unrolled
            w_ref = refs[1 + 2 * li]
            b_ref = refs[2 + 2 * li]
            acc = jnp.dot(h, w_ref[...],
                          preferred_element_type=jnp.float32) + b_ref[...]
            if li < num_linear - 1:
                # Dropout(0.1): eval/inference identity (see TODO above).
                h = jnp.maximum(acc, 0.0).astype(jnp.bfloat16)
            else:
                out_ref[...] = acc.astype(out_ref.dtype)   # lane-dense bf16 store
    return kernel


def pad_params(params):
    """One-time weight prep (hoisted out of the per-call forward).

    W -> bf16, zero-padded: the first in_dim to the bf16 sublane quantum (16),
    every out_dim to a 128-lane multiple. b -> f32 with shape (1, out_p).
    Returns a flat tuple (W0, b0, W1, b1, ...) of device arrays.
    """
    flat = []
    in_p = _round_up(params[0][0].shape[0], BF16_SUBLANE)
    for (w, b) in params:
        di, do = w.shape
        do_p = _round_up(do, LANE)
        wp = jnp.zeros((in_p, do_p), jnp.bfloat16).at[:di, :do].set(
            w.astype(jnp.bfloat16))
        bp = jnp.zeros((1, do_p), jnp.float32).at[:, :do].set(
            b.reshape(1, -1).astype(jnp.float32))
        flat.extend([wp, bp])
        in_p = do_p
    return tuple(flat)


@functools.partial(jax.jit, static_argnames=("action_dim", "num_linear", "tm"))
def _dqn_forward_padded(x, *padded_flat, action_dim, num_linear, tm=None):
    """Jitted forward on pre-padded weights: pad x -> pallas_call -> slice."""
    B, K0 = x.shape
    padded = [(padded_flat[2 * i], padded_flat[2 * i + 1])
              for i in range(num_linear)]
    K0p = padded[0][0].shape[0]        # 16 for state_dim=15 (bf16 sublane pad)
    Ap = padded[-1][0].shape[1]        # 128 for action_dim=4 (lane pad)

    tm_eff = _choose_tm(B, tm)
    Bp = _round_up(B, tm_eff)

    # x feature dim is padded only to 16, not 128; the block is full-extent in
    # that dim, so the (8,128) BlockSpec rule is satisfied while the streaming
    # x-tile DMA stays small. The MXU pads short K internally.
    xp = jnp.zeros((Bp, K0p), jnp.bfloat16).at[:B, :K0].set(
        x.astype(jnp.bfloat16))

    grid = (Bp // tm_eff,)
    in_specs = [pl.BlockSpec((tm_eff, K0p), lambda i: (i, 0))]
    for wp, bp in padded:
        # Constant block index -> weights/biases stay VMEM-resident across grid
        # steps (no re-DMA). Total footprint ~0.5 MiB: no vmem_limit override
        # needed on any TPU generation.
        in_specs.append(pl.BlockSpec(wp.shape, lambda i: (0, 0)))
        in_specs.append(pl.BlockSpec(bp.shape, lambda i: (0, 0)))
    out_spec = pl.BlockSpec((tm_eff, Ap), lambda i: (i, 0))

    flops = sum(2 * Bp * wp.shape[0] * wp.shape[1] for wp, _ in padded)
    bytes_accessed = (xp.size * 2
                      + sum(wp.size * 2 + bp.size * 4 for wp, bp in padded)
                      + Bp * Ap * 2)
    cost = pl.CostEstimate(flops=flops, transcendentals=0,
                           bytes_accessed=bytes_accessed)

    out_padded = pl.pallas_call(
        make_dqn_kernel(num_linear),
        out_shape=jax.ShapeDtypeStruct((Bp, Ap), jnp.bfloat16),
        grid=grid,
        in_specs=in_specs,
        out_specs=out_spec,
        compiler_params=pltpu.CompilerParams(
            dimension_semantics=("parallel",),   # shard batch tiles across TCs
        ),
        cost_estimate=cost,
    )(xp, *padded_flat)

    return out_padded[:B, :action_dim].astype(jnp.float32)


def make_dqn_forward(params, *, tm=None):
    """Pads/casts the weights ONCE and returns a jitted forward(x) closure."""
    padded_flat = pad_params(params)
    action_dim = params[-1][0].shape[1]
    num_linear = len(params)

    def forward(x):
        return _dqn_forward_padded(x, *padded_flat, action_dim=action_dim,
                                   num_linear=num_linear, tm=tm)
    return forward


def init_params(key, state_dim, hidden_dim, action_dim, num_layers):
    """Parameter init mirroring nn.Linear defaults (U(-1/sqrt(fan_in), ...))."""
    dims = [state_dim] + [hidden_dim] * num_layers + [action_dim]
    params = []
    for i in range(len(dims) - 1):
        key, kw, kb = jax.random.split(key, 3)
        bound = 1.0 / float(dims[i]) ** 0.5
        w = jax.random.uniform(kw, (dims[i], dims[i + 1]), jnp.float32,
                               -bound, bound)
        b = jax.random.uniform(kb, (dims[i + 1],), jnp.float32, -bound, bound)
        params.append((w, b))
    return params


def reference_forward_bf16(x, params):
    """Mirrors the kernel's numerics: bf16 operands, f32 MXU accumulation,
    f32 bias/ReLU, bf16 output store."""
    h = x.astype(jnp.bfloat16)
    n = len(params)
    for i, (w, b) in enumerate(params):
        acc = jnp.dot(h, w.astype(jnp.bfloat16),
                      preferred_element_type=jnp.float32) + b.reshape(1, -1)
        if i < n - 1:
            h = jnp.maximum(acc, 0.0).astype(jnp.bfloat16)
        else:
            return acc.astype(jnp.bfloat16).astype(jnp.float32)


def reference_forward_f32(x, params):
    """Plain f32 reference matching the PyTorch module's eval-mode forward."""
    h = x
    n = len(params)
    for i, (w, b) in enumerate(params):
        h = jnp.dot(h, w) + b.reshape(1, -1)
        if i < n - 1:
            h = jnp.maximum(h, 0.0)
    return h


if __name__ == "__main__":
    # RLConfig defaults: state_dim=15, action_dim=4, hidden_dim=256,
    # num_layers=3; batch = RLConfig.batch_size = 64.
    state_dim, action_dim, hidden_dim, num_layers = 15, 4, 256, 3
    batch = 64

    key = jax.random.PRNGKey(0)
    key, kx = jax.random.split(key)
    x = jax.random.normal(kx, (batch, state_dim), jnp.float32)
    params = init_params(key, state_dim, hidden_dim, action_dim, num_layers)

    forward = make_dqn_forward(params)        # weight pad/cast hoisted here
    out = jax.block_until_ready(forward(x))   # first call: trace + compile
    out = jax.block_until_ready(forward(x))   # steady state: kernel only

    assert out.shape == (batch, action_dim)
    assert out.dtype == jnp.float32

    ref_bf16 = reference_forward_bf16(x, params)
    ref_f32 = reference_forward_f32(x, params)
    err_bf16 = float(jnp.max(jnp.abs(out - ref_bf16)))
    err_f32 = float(jnp.max(jnp.abs(out - ref_f32)))
    assert jnp.allclose(out, ref_bf16, atol=1e-2, rtol=1e-2), (
        f"mismatch vs bf16-path reference, max abs err = {err_bf16}")
    assert jnp.allclose(out, ref_f32, atol=5e-2, rtol=5e-2), (
        f"mismatch vs f32 reference, max abs err = {err_f32}")

    print("KERNEL_OK")
</pallas_src>

<mosaic_0001>
module attributes {stable_mosaic.version = 11 : i64} {
  func.func @kernel(%arg0: i32, %arg1: memref<64x16xbf16, #tpu.memory_space<vmem>>, %arg2: memref<16x256xbf16, #tpu.memory_space<vmem>>, %arg3: memref<1x256xf32, #tpu.memory_space<vmem>>, %arg4: memref<256x256xbf16, #tpu.memory_space<vmem>>, %arg5: memref<1x256xf32, #tpu.memory_space<vmem>>, %arg6: memref<256x256xbf16, #tpu.memory_space<vmem>>, %arg7: memref<1x256xf32, #tpu.memory_space<vmem>>, %arg8: memref<256x128xbf16, #tpu.memory_space<vmem>>, %arg9: memref<1x128xf32, #tpu.memory_space<vmem>>, %arg10: memref<64x128xbf16, #tpu.memory_space<vmem>>) attributes {dimension_semantics = [#tpu.dimension_semantics<parallel>], iteration_bounds = array<i64: 1>, scalar_prefetch = 0 : i64, scratch_operands = 0 : i64, tpu.core_type = #tpu.core_type<tc>, window_params = [{transform_indices = @transform_0, window_bounds = array<i64: 64, 16>}, {pipeline_mode = #tpu.pipeline_mode<synchronous>, transform_indices = @transform_1, window_bounds = array<i64: 16, 256>}, {pipeline_mode = #tpu.pipeline_mode<synchronous>, transform_indices = @transform_2, window_bounds = array<i64: 1, 256>}, {pipeline_mode = #tpu.pipeline_mode<synchronous>, transform_indices = @transform_3, window_bounds = array<i64: 256, 256>}, {pipeline_mode = #tpu.pipeline_mode<synchronous>, transform_indices = @transform_4, window_bounds = array<i64: 1, 256>}, {pipeline_mode = #tpu.pipeline_mode<synchronous>, transform_indices = @transform_5, window_bounds = array<i64: 256, 256>}, {pipeline_mode = #tpu.pipeline_mode<synchronous>, transform_indices = @transform_6, window_bounds = array<i64: 1, 256>}, {pipeline_mode = #tpu.pipeline_mode<synchronous>, transform_indices = @transform_7, window_bounds = array<i64: 256, 128>}, {pipeline_mode = #tpu.pipeline_mode<synchronous>, transform_indices = @transform_8, window_bounds = array<i64: 1, 128>}, {transform_indices = @transform_9, window_bounds = array<i64: 64, 128>}]} {
    %c0 = arith.constant 0 : index
    %c0_0 = arith.constant 0 : index
    %0 = vector.load %arg1[%c0, %c0_0] : memref<64x16xbf16, #tpu.memory_space<vmem>>, vector<64x16xbf16>
    %c0_1 = arith.constant 0 : index
    %c0_2 = arith.constant 0 : index
    %1 = vector.load %arg2[%c0_1, %c0_2] : memref<16x256xbf16, #tpu.memory_space<vmem>>, vector<16x256xbf16>
    %cst = arith.constant dense<0.000000e+00> : vector<64x256xf32>
    %2 = tpu.matmul %0, %1, %cst {dimension_numbers = #tpu.dot_dimension_numbers<[1], [0], [0], [1], [0, 0, 1, 1], [], []>} : vector<64x16xbf16>, vector<16x256xbf16>, vector<64x256xf32> -> vector<64x256xf32>
    %c0_3 = arith.constant 0 : index
    %c0_4 = arith.constant 0 : index
    %3 = vector.load %arg3[%c0_3, %c0_4] : memref<1x256xf32, #tpu.memory_space<vmem>>, vector<1x256xf32>
    %4 = vector.broadcast %3 : vector<1x256xf32> to vector<64x256xf32>
    %5 = arith.addf %2, %4 : vector<64x256xf32>
    %cst_5 = arith.constant 0.000000e+00 : f32
    %6 = vector.broadcast %cst_5 : f32 to vector<64x256xf32>
    %7 = arith.maximumf %5, %6 : vector<64x256xf32>
    %8 = arith.truncf %7 : vector<64x256xf32> to vector<64x256xbf16>
    %c0_6 = arith.constant 0 : index
    %c0_7 = arith.constant 0 : index
    %9 = vector.load %arg4[%c0_6, %c0_7] : memref<256x256xbf16, #tpu.memory_space<vmem>>, vector<256x256xbf16>
    %cst_8 = arith.constant dense<0.000000e+00> : vector<64x256xf32>
    %10 = tpu.matmul %8, %9, %cst_8 {dimension_numbers = #tpu.dot_dimension_numbers<[1], [0], [0], [1], [0, 0, 1, 1], [], []>} : vector<64x256xbf16>, vector<256x256xbf16>, vector<64x256xf32> -> vector<64x256xf32>
    %c0_9 = arith.constant 0 : index
    %c0_10 = arith.constant 0 : index
    %11 = vector.load %arg5[%c0_9, %c0_10] : memref<1x256xf32, #tpu.memory_space<vmem>>, vector<1x256xf32>
    %12 = vector.broadcast %11 : vector<1x256xf32> to vector<64x256xf32>
    %13 = arith.addf %10, %12 : vector<64x256xf32>
    %cst_11 = arith.constant 0.000000e+00 : f32
    %14 = vector.broadcast %cst_11 : f32 to vector<64x256xf32>
    %15 = arith.maximumf %13, %14 : vector<64x256xf32>
    %16 = arith.truncf %15 : vector<64x256xf32> to vector<64x256xbf16>
    %c0_12 = arith.constant 0 : index
    %c0_13 = arith.constant 0 : index
    %17 = vector.load %arg6[%c0_12, %c0_13] : memref<256x256xbf16, #tpu.memory_space<vmem>>, vector<256x256xbf16>
    %cst_14 = arith.constant dense<0.000000e+00> : vector<64x256xf32>
    %18 = tpu.matmul %16, %17, %cst_14 {dimension_numbers = #tpu.dot_dimension_numbers<[1], [0], [0], [1], [0, 0, 1, 1], [], []>} : vector<64x256xbf16>, vector<256x256xbf16>, vector<64x256xf32> -> vector<64x256xf32>
    %c0_15 = arith.constant 0 : index
    %c0_16 = arith.constant 0 : index
    %19 = vector.load %arg7[%c0_15, %c0_16] : memref<1x256xf32, #tpu.memory_space<vmem>>, vector<1x256xf32>
    %20 = vector.broadcast %19 : vector<1x256xf32> to vector<64x256xf32>
    %21 = arith.addf %18, %20 : vector<64x256xf32>
    %cst_17 = arith.constant 0.000000e+00 : f32
    %22 = vector.broadcast %cst_17 : f32 to vector<64x256xf32>
    %23 = arith.maximumf %21, %22 : vector<64x256xf32>
    %24 = arith.truncf %23 : vector<64x256xf32> to vector<64x256xbf16>
    %c0_18 = arith.constant 0 : index
    %c0_19 = arith.constant 0 : index
    %25 = vector.load %arg8[%c0_18, %c0_19] : memref<256x128xbf16, #tpu.memory_space<vmem>>, vector<256x128xbf16>
    %cst_20 = arith.constant dense<0.000000e+00> : vector<64x128xf32>
    %26 = tpu.matmul %24, %25, %cst_20 {dimension_numbers = #tpu.dot_dimension_numbers<[1], [0], [0], [1], [0, 0, 1, 1], [], []>} : vector<64x256xbf16>, vector<256x128xbf16>, vector<64x128xf32> -> vector<64x128xf32>
    %c0_21 = arith.constant 0 : index
    %c0_22 = arith.constant 0 : index
    %27 = vector.load %arg9[%c0_21, %c0_22] : memref<1x128xf32, #tpu.memory_space<vmem>>, vector<1x128xf32>
    %28 = vector.broadcast %27 : vector<1x128xf32> to vector<64x128xf32>
    %29 = arith.addf %26, %28 : vector<64x128xf32>
    %30 = arith.truncf %29 : vector<64x128xf32> to vector<64x128xbf16>
    %c0_23 = arith.constant 0 : index
    %c0_24 = arith.constant 0 : index
    %31 = vector.load %arg10[%c0_23, %c0_24] : memref<64x128xbf16, #tpu.memory_space<vmem>>, vector<64x128xbf16>
    tpu.vector_store %arg10[%c0_23, %c0_24], %30 {strides = array<i32>} : memref<64x128xbf16, #tpu.memory_space<vmem>>, vector<64x128xbf16>,
    return
  }
  func.func @transform_0(%arg0: i32) -> (i32, i32) {
    %c0_i32 = arith.constant 0 : i32
    %c0_i32_0 = arith.constant 0 : i32
    return %arg0, %c0_i32 : i32, i32
  }
  func.func @transform_1(%arg0: i32) -> (i32, i32) {
    %c0_i32 = arith.constant 0 : i32
    %c0_i32_0 = arith.constant 0 : i32
    %c0_i32_1 = arith.constant 0 : i32
    return %c0_i32, %c0_i32_0 : i32, i32
  }
  func.func @transform_2(%arg0: i32) -> (i32, i32) {
    %c0_i32 = arith.constant 0 : i32
    %c0_i32_0 = arith.constant 0 : i32
    %c0_i32_1 = arith.constant 0 : i32
    return %c0_i32, %c0_i32_0 : i32, i32
  }
  func.func @transform_3(%arg0: i32) -> (i32, i32) {
    %c0_i32 = arith.constant 0 : i32
    %c0_i32_0 = arith.constant 0 : i32
    %c0_i32_1 = arith.constant 0 : i32
    return %c0_i32, %c0_i32_0 : i32, i32
  }
  func.func @transform_4(%arg0: i32) -> (i32, i32) {
    %c0_i32 = arith.constant 0 : i32
    %c0_i32_0 = arith.constant 0 : i32
    %c0_i32_1 = arith.constant 0 : i32
    return %c0_i32, %c0_i32_0 : i32, i32
  }
  func.func @transform_5(%arg0: i32) -> (i32, i32) {
    %c0_i32 = arith.constant 0 : i32
    %c0_i32_0 = arith.constant 0 : i32
    %c0_i32_1 = arith.constant 0 : i32
    return %c0_i32, %c0_i32_0 : i32, i32
  }
  func.func @transform_6(%arg0: i32) -> (i32, i32) {
    %c0_i32 = arith.constant 0 : i32
    %c0_i32_0 = arith.constant 0 : i32
    %c0_i32_1 = arith.constant 0 : i32
    return %c0_i32, %c0_i32_0 : i32, i32
  }
  func.func @transform_7(%arg0: i32) -> (i32, i32) {
    %c0_i32 = arith.constant 0 : i32
    %c0_i32_0 = arith.constant 0 : i32
    %c0_i32_1 = arith.constant 0 : i32
    return %c0_i32, %c0_i32_0 : i32, i32
  }
  func.func @transform_8(%arg0: i32) -> (i32, i32) {
    %c0_i32 = arith.constant 0 : i32
    %c0_i32_0 = arith.constant 0 : i32
    %c0_i32_1 = arith.constant 0 : i32
    return %c0_i32, %c0_i32_0 : i32, i32
  }
  func.func @transform_9(%arg0: i32) -> (i32, i32) {
    %c0_i32 = arith.constant 0 : i32
    %c0_i32_0 = arith.constant 0 : i32
    return %arg0, %c0_i32 : i32, i32
  }
}

</mosaic_0001>

<llo_original>
// kernel: _dqn_forward_padded.1
$region0: #{_dqn_forward_padded.1}
  #allocation0 [shape = 'u32[]', space=smem, size = 0x4, offset = 0x4, fixed_abs, tag = 'smem constant byte address 0x4 - core index']
  #allocation1 [shape = 'u32[144,128]{1,0:T(1,128)}', space=vmem, size = 0x12000, scoped, tag = 'internal scratch']
  %s0 = inlined_call_operand.vmem [shape: bf16[64,16], index: 0, kind: input, shape index: {}]
  %s1 = inlined_call_operand.vmem [shape: bf16[16,256], index: 1, kind: input, shape index: {}]
  %s2 = inlined_call_operand.vmem [shape: f32[1,256], index: 2, kind: input, shape index: {}]
  %s3 = inlined_call_operand.hbm [shape: bf16[256,256], index: 3, kind: input, shape index: {}]
  %s4 = inlined_call_operand.vmem [shape: f32[1,256], index: 4, kind: input, shape index: {}]
  %s5 = inlined_call_operand.hbm [shape: bf16[256,256], index: 5, kind: input, shape index: {}]
  %s6 = inlined_call_operand.vmem [shape: f32[1,256], index: 6, kind: input, shape index: {}]
  %s7 = inlined_call_operand.vmem [shape: bf16[256,128], index: 7, kind: input, shape index: {}]
  %s8 = inlined_call_operand.vmem [shape: f32[1,128], index: 8, kind: input, shape index: {}]
  %s9 = inlined_call_operand.vmem [shape: bf16[64,128], index: 9, kind: output, shape index: {}]
  %s10 = sld [smem:[#allocation0]]
  $region54: #{_dqn_forward_padded.1} parent=0
    _
  %s12 = ssub.s32 1, %s10
  %s13 = scalar_select 0, %s12, %s10
  $region1: #{_dqn_forward_padded.1} parent=0
    #allocation2 [shape = 'u8[131072]{0}', space=vmem, size = 0x20000, scoped, tag = 'input window, operand 3, single buffered']
    #allocation3 [shape = 's32[1]{0}', space=sflag, size = 0x4, scoped, tag = 'scoped memory for _dqn_forward_padded.1']
    #allocation4 [shape = 'u8[131072]{0}', space=vmem, size = 0x20000, scoped, tag = 'input window, operand 5, single buffered']
    #allocation5 [shape = 's32[1]{0}', space=sflag, size = 0x4, scoped, tag = 'scoped memory for _dqn_forward_padded.1']
    %14 = vsyncpa [#allocation3], 0
    %15 = vsyncpa [#allocation5], 0
    // Predicated region
    $region2: #{_dqn_forward_padded.1} parent=1 // pred_check
      _
    $region3: #{_dqn_forward_padded.1} parent=1 // pred_check_branch
      %17 = sbr.rel (0) target = $region5
    $region4: #{_dqn_forward_padded.1} parent=1 // pred_region
      _
    $region5: #{_dqn_forward_padded.1} parent=1 // pred_fallthru
      _
    // Predicated region
    $region6: #{_dqn_forward_padded.1} parent=1 // pred_check
      _
    $region7: #{_dqn_forward_padded.1} parent=1 // pred_check_branch
      %19 = sbr.rel (0) target = $region9
    $region8: #{_dqn_forward_padded.1} parent=1 // pred_region
      _
    $region9: #{_dqn_forward_padded.1} parent=1 // pred_fallthru
      _
    // Predicated region
    $region10: #{_dqn_forward_padded.1} parent=1 // pred_check
      _
    $region11: #{_dqn_forward_padded.1} parent=1 // pred_check_branch
      %21 = sbr.rel (0) target = $region13
    $region12: #{_dqn_forward_padded.1} parent=1 // pred_region
      _
    $region13: #{_dqn_forward_padded.1} parent=1 // pred_fallthru
      _
    // Predicated region
    $region14: #{_dqn_forward_padded.1} parent=1 // pred_check
      _
    $region15: #{_dqn_forward_padded.1} parent=1 // pred_check_branch
      %23 = sbr.rel (0) target = $region17
    $region16: #{_dqn_forward_padded.1} parent=1 // pred_region
      %s25 = ssub.s32 4096, 4096
      %26 = vsyncadd [#allocation3], %s25
      %s27 = sshll.u32 [#allocation2], 4
      %s28 = int_to_ptr.vmem [resolvable:$true] %s27
      %33 = dma.hbm_to_vmem [thread:$0]  %s3, 4096, %s28, [#allocation3], 128, 128, 8
    $region17: #{_dqn_forward_padded.1} parent=1 // pred_fallthru
      _
    // Predicated region
    $region18: #{_dqn_forward_padded.1} parent=1 // pred_check
      _
    $region19: #{_dqn_forward_padded.1} parent=1 // pred_check_branch
      %35 = sbr.rel (0) target = $region21
    $region20: #{_dqn_forward_padded.1} parent=1 // pred_region
      _
    $region21: #{_dqn_forward_padded.1} parent=1 // pred_fallthru
      _
    // Predicated region
    $region22: #{_dqn_forward_padded.1} parent=1 // pred_check
      _
    $region23: #{_dqn_forward_padded.1} parent=1 // pred_check_branch
      %37 = sbr.rel (0) target = $region25
    $region24: #{_dqn_forward_padded.1} parent=1 // pred_region
      %s39 = ssub.s32 4096, 4096
      %40 = vsyncadd [#allocation5], %s39
      %s41 = sshll.u32 [#allocation4], 4
      %s42 = int_to_ptr.vmem [resolvable:$true] %s41
      %47 = dma.hbm_to_vmem [thread:$0]  %s5, 4096, %s42, [#allocation5], 128, 128, 8
    $region25: #{_dqn_forward_padded.1} parent=1 // pred_fallthru
      _
    // Predicated region
    $region26: #{_dqn_forward_padded.1} parent=1 // pred_check
      _
    $region27: #{_dqn_forward_padded.1} parent=1 // pred_check_branch
      %49 = sbr.rel (0) target = $region29
    $region28: #{_dqn_forward_padded.1} parent=1 // pred_region
      _
    $region29: #{_dqn_forward_padded.1} parent=1 // pred_fallthru
      _
    // Predicated region
    $region30: #{_dqn_forward_padded.1} parent=1 // pred_check
      _
    $region31: #{_dqn_forward_padded.1} parent=1 // pred_check_branch
      %51 = sbr.rel (0) target = $region33
    $region32: #{_dqn_forward_padded.1} parent=1 // pred_region
      _
    $region33: #{_dqn_forward_padded.1} parent=1 // pred_fallthru
      _
    // Predicated region
    $region34: #{_dqn_forward_padded.1} parent=1 // pred_check
      _
    $region35: #{_dqn_forward_padded.1} parent=1 // pred_check_branch
      %53 = sbr.rel (0) target = $region37
    $region36: #{_dqn_forward_padded.1} parent=1 // pred_region
      _
    $region37: #{_dqn_forward_padded.1} parent=1 // pred_fallthru
      _
    // Predicated region
    $region38: #{_dqn_forward_padded.1} parent=1 // pred_check
      _
    $region39: #{_dqn_forward_padded.1} parent=1 // pred_check_branch
      %55 = sbr.rel (0) target = $region41
    $region40: #{_dqn_forward_padded.1} parent=1 // pred_region
      %56 = dma.done [#allocation3], 4096
    $region41: #{_dqn_forward_padded.1} parent=1 // pred_fallthru
      _
    // Predicated region
    $region42: #{_dqn_forward_padded.1} parent=1 // pred_check
      _
    $region43: #{_dqn_forward_padded.1} parent=1 // pred_check_branch
      %58 = sbr.rel (0) target = $region45
    $region44: #{_dqn_forward_padded.1} parent=1 // pred_region
      %59 = dma.done [#allocation5], 4096
    $region45: #{_dqn_forward_padded.1} parent=1 // pred_fallthru
      _
    %v61 = vld [vmem:[%s0] sm:$0xf]
    %v62 = vld [vmem:[%s0 + $0x4] sm:$0xf]
    %v63 = vld [vmem:[%s0 + $0x8] sm:$0xf]
    %v64 = vld [vmem:[%s0 + $0xc] sm:$0xf]
    %v65 = vld [vmem:[%s0 + $0x10] sm:$0xf]
    %v66 = vld [vmem:[%s0 + $0x14] sm:$0xf]
    %v67 = vld [vmem:[%s0 + $0x18] sm:$0xf]
    %v68 = vld [vmem:[%s0 + $0x1c] sm:$0xf]
    %v69 = vld [vmem:[%s1] sm:$0xff]
    %v70 = vld [vmem:[%s1 + $0x8] sm:$0xff]
    %v71 = vld [vmem:[%s2] sm:$0x3]
    %v73 = vlaneseq
    %v74 = vshrl.u32 %v73, 7
    %v75 = vsub.s32 0, %v74
    %v76 = vrot.slane %v71, %v75
    %v77 = vlaneseq
    %v78 = vshrl.u32 %v77, 7
    %v79 = vsub.s32 1, %v78
    %v80 = vrot.slane %v71, %v79
    %v91 = vunpack.c.l.b16 %v61
    %v92 = vunpack.c.l.b16 %v62
    %v93 = vunpack.c.l.b16 %v63
    %v94 = vunpack.c.l.b16 %v64
    %v95 = vunpack.c.l.b16 %v65
    %v96 = vunpack.c.l.b16 %v66
    %v97 = vunpack.c.l.b16 %v67
    %v98 = vunpack.c.l.b16 %v68
    %v99 = vpack.c.b16 %v92, %v91
    %v100 = vpack.c.b16 %v94, %v93
    %v101 = vpack.c.b16 %v96, %v95
    %v102 = vpack.c.b16 %v98, %v97
    %v105 = vunpack.c.l.b16 %v69
    %v106 = vunpack.c.h.b16 %v69
    %v107 = vunpack.c.l.b16 %v70
    %v108 = vunpack.c.h.b16 %v70
    %v109 = vpack.c.b16 %v107, %v105
    %v110 = vpack.c.b16 %v108, %v106
    %vm113 = vcmask 130048
    %v115 = vsel %vm113, %v99, 0
    %v118 = vsel %vm113, %v100, 0
    %v121 = vsel %vm113, %v101, 0
    %v124 = vsel %vm113, %v102, 0
    %126 = vmatprep.subr.bf16.mxu0 %v110
    %127 = vmatpush1.bf16.msra.mxu0 %v109
    %128 = vmatprep.subr.bf16.mxu0 0
    %129 = vmatpush1.bf16.msra.mxu0 0
    %130 = vmatprep.subr.bf16.mxu0 0
    %131 = vmatpush1.bf16.msra.mxu0 0
    %132 = vmatprep.subr.bf16.mxu0 0
    %133 = vmatpush1.bf16.msra.mxu0 0
    %134 = vmatprep.subr.bf16.mxu0 0
    %135 = vmatpush1.bf16.msra.mxu0 0
    %136 = vmatprep.subr.bf16.mxu0 0
    %137 = vmatpush1.bf16.msra.mxu0 0
    %138 = vmatprep.subr.bf16.mxu0 0
    %139 = vmatpush1.bf16.msra.mxu0 0
    %140 = vmatprep.subr.bf16.mxu0 0
    %141 = vmatpush1.bf16.msra.mxu0 0
    %142 = vmatprep.subr.bf16.mxu0 0
    %143 = vmatpush1.bf16.msra.mxu0 0
    %144 = vmatprep.subr.bf16.mxu0 0
    %145 = vmatpush1.bf16.msra.mxu0 0
    %146 = vmatprep.subr.bf16.mxu0 0
    %147 = vmatpush1.bf16.msra.mxu0 0
    %148 = vmatprep.subr.bf16.mxu0 0
    %149 = vmatpush1.bf16.msra.mxu0 0
    %150 = vmatprep.subr.bf16.mxu0 0
    %151 = vmatpush1.bf16.msra.mxu0 0
    %152 = vmatprep.subr.bf16.mxu0 0
    %153 = vmatpush1.bf16.msra.mxu0 0
    %154 = vmatprep.subr.bf16.mxu0 0
    %155 = vmatpush1.bf16.msra.mxu0 0
    %156 = vmatprep.subr.bf16.mxu0 0
    %157 = vmatpush1.bf16.msra.mxu0 0
    %158 = vmatprep.mubr.bf16.mxu0 0
    %159 = vmatmul.mubr.bf16.gmra.mrb[0].mxu0 %v115
    %v160 = vpop.f32.mrb[0].mxu0
    %v161 = vadd.f32 %v76, %v160
    %v162 = vpop.f32.mrb[0].mxu0
    %v163 = vadd.f32 %v80, %v162
    %v164 = vpop.f32.mrb[0].mxu0
    %v165 = vadd.f32 %v76, %v164
    %v166 = vpop.f32.mrb[0].mxu0
    %v167 = vadd.f32 %v80, %v166
    %168 = vmatprep.mubr.bf16.mxu0 0
    %169 = vmatmul.mubr.bf16.gmra.mrb[0].mxu0 %v118
    %v170 = vpop.f32.mrb[0].mxu0
    %v171 = vadd.f32 %v76, %v170
    %v172 = vpop.f32.mrb[0].mxu0
    %v173 = vadd.f32 %v80, %v172
    %v174 = vpop.f32.mrb[0].mxu0
    %v175 = vadd.f32 %v76, %v174
    %v176 = vpop.f32.mrb[0].mxu0
    %v177 = vadd.f32 %v80, %v176
    %178 = vmatprep.mubr.bf16.mxu0 0
    %179 = vmatmul.mubr.bf16.gmra.mrb[0].mxu0 %v121
    %v180 = vpop.f32.mrb[0].mxu0
    %v181 = vadd.f32 %v76, %v180
    %v182 = vpop.f32.mrb[0].mxu0
    %v183 = vadd.f32 %v80, %v182
    %v184 = vpop.f32.mrb[0].mxu0
    %v185 = vadd.f32 %v76, %v184
    %v186 = vpop.f32.mrb[0].mxu0
    %v187 = vadd.f32 %v80, %v186
    %188 = vmatprep.mubr.bf16.mxu0 0
    %189 = vmatmul.mubr.bf16.gmra.mrb[0].mxu0 %v124
    %v190 = vpop.f32.mrb[0].mxu0
    %v191 = vadd.f32 %v76, %v190
    %v192 = vpop.f32.mrb[0].mxu0
    %v193 = vadd.f32 %v80, %v192
    %v194 = vpop.f32.mrb[0].mxu0
    %v195 = vadd.f32 %v76, %v194
    %v196 = vpop.f32.mrb[0].mxu0
    %v197 = vadd.f32 %v80, %v196
    %198 = vdwg.mxu0
    %v199 = vmax.f32 %v161, 0.0
    %v200 = vmax.f32 %v163, 0.0
    %v201 = vmax.f32 %v165, 0.0
    %v202 = vmax.f32 %v167, 0.0
    %v203 = vmax.f32 %v171, 0.0
    %v204 = vmax.f32 %v173, 0.0
    %v205 = vmax.f32 %v175, 0.0
    %v206 = vmax.f32 %v177, 0.0
    %v207 = vmax.f32 %v181, 0.0
    %v208 = vmax.f32 %v183, 0.0
    %v209 = vmax.f32 %v185, 0.0
    %v210 = vmax.f32 %v187, 0.0
    %v211 = vmax.f32 %v191, 0.0
    %v212 = vmax.f32 %v193, 0.0
    %v213 = vmax.f32 %v195, 0.0
    %v214 = vmax.f32 %v197, 0.0
    %v215 = vpack.c.bf16 %v201, %v199
    %v216 = vpack.c.bf16 %v202, %v200
    %v217 = vpack.c.bf16 %v205, %v203
    %v218 = vpack.c.bf16 %v206, %v204
    %v219 = vpack.c.bf16 %v209, %v207
    %v220 = vpack.c.bf16 %v210, %v208
    %v221 = vpack.c.bf16 %v213, %v211
    %v222 = vpack.c.bf16 %v214, %v212
    %v223 = vld [vmem:[#allocation2] sm:$0xff]
    %v224 = vld [vmem:[#allocation2 + $0x8] sm:$0xff]
    %v225 = vld [vmem:[#allocation2 + $0x10] sm:$0xff]
    %v226 = vld [vmem:[#allocation2 + $0x18] sm:$0xff]
    %v227 = vld [vmem:[#allocation2 + $0x20] sm:$0xff]
    %v228 = vld [vmem:[#allocation2 + $0x28] sm:$0xff]
    %v229 = vld [vmem:[#allocation2 + $0x30] sm:$0xff]
    %v230 = vld [vmem:[#allocation2 + $0x38] sm:$0xff]
    %v231 = vld [vmem:[#allocation2 + $0x40] sm:$0xff]
    %v232 = vld [vmem:[#allocation2 + $0x48] sm:$0xff]
    %v233 = vld [vmem:[#allocation2 + $0x50] sm:$0xff]
    %v234 = vld [vmem:[#allocation2 + $0x58] sm:$0xff]
    %v235 = vld [vmem:[#allocation2 + $0x60] sm:$0xff]
    %v236 = vld [vmem:[#allocation2 + $0x68] sm:$0xff]
    %v237 = vld [vmem:[#allocation2 + $0x70] sm:$0xff]
    %v238 = vld [vmem:[#allocation2 + $0x78] sm:$0xff]
    %v239 = vld [vmem:[#allocation2 + $0x80] sm:$0xff]
    %v240 = vld [vmem:[#allocation2 + $0x88] sm:$0xff]
    %v241 = vld [vmem:[#allocation2 + $0x90] sm:$0xff]
    %v242 = vld [vmem:[#allocation2 + $0x98] sm:$0xff]
    %v243 = vld [vmem:[#allocation2 + $0xa0] sm:$0xff]
    %v244 = vld [vmem:[#allocation2 + $0xa8] sm:$0xff]
    %v245 = vld [vmem:[#allocation2 + $0xb0] sm:$0xff]
    %v246 = vld [vmem:[#allocation2 + $0xb8] sm:$0xff]
    %v247 = vld [vmem:[#allocation2 + $0xc0] sm:$0xff]
    %v248 = vld [vmem:[#allocation2 + $0xc8] sm:$0xff]
    %v249 = vld [vmem:[#allocation2 + $0xd0] sm:$0xff]
    %v250 = vld [vmem:[#allocation2 + $0xd8] sm:$0xff]
    %v251 = vld [vmem:[#allocation2 + $0xe0] sm:$0xff]
    %v252 = vld [vmem:[#allocation2 + $0xe8] sm:$0xff]
    %v253 = vld [vmem:[#allocation2 + $0xf0] sm:$0xff]
    %v254 = vld [vmem:[#allocation2 + $0xf8] sm:$0xff]
    %v255 = vld [vmem:[%s4] sm:$0x3]
    %v257 = vlaneseq
    %v258 = vshrl.u32 %v257, 7
    %v259 = vsub.s32 0, %v258
    %v260 = vrot.slane %v255, %v259
    %v261 = vlaneseq
    %v262 = vshrl.u32 %v261, 7
    %v263 = vsub.s32 1, %v262
    %v264 = vrot.slane %v255, %v263
    %v299 = vunpack.c.l.b16 %v223
    %v300 = vunpack.c.h.b16 %v223
    %v301 = vunpack.c.l.b16 %v224
    %v302 = vunpack.c.h.b16 %v224
    %v303 = vunpack.c.l.b16 %v225
    %v304 = vunpack.c.h.b16 %v225
    %v305 = vunpack.c.l.b16 %v226
    %v306 = vunpack.c.h.b16 %v226
    %v307 = vunpack.c.l.b16 %v227
    %v308 = vunpack.c.h.b16 %v227
    %v309 = vunpack.c.l.b16 %v228
    %v310 = vunpack.c.h.b16 %v228
    %v311 = vunpack.c.l.b16 %v229
    %v312 = vunpack.c.h.b16 %v229
    %v313 = vunpack.c.l.b16 %v230
    %v314 = vunpack.c.h.b16 %v230
    %v315 = vunpack.c.l.b16 %v231
    %v316 = vunpack.c.h.b16 %v231
    %v317 = vunpack.c.l.b16 %v232
    %v318 = vunpack.c.h.b16 %v232
    %v319 = vunpack.c.l.b16 %v233
    %v320 = vunpack.c.h.b16 %v233
    %v321 = vunpack.c.l.b16 %v234
    %v322 = vunpack.c.h.b16 %v234
    %v323 = vunpack.c.l.b16 %v235
    %v324 = vunpack.c.h.b16 %v235
    %v325 = vunpack.c.l.b16 %v236
    %v326 = vunpack.c.h.b16 %v236
    %v327 = vunpack.c.l.b16 %v237
    %v328 = vunpack.c.h.b16 %v237
    %v329 = vunpack.c.l.b16 %v238
    %v330 = vunpack.c.h.b16 %v238
    %v331 = vunpack.c.l.b16 %v239
    %v332 = vunpack.c.h.b16 %v239
    %v333 = vunpack.c.l.b16 %v240
    %v334 = vunpack.c.h.b16 %v240
    %v335 = vunpack.c.l.b16 %v241
    %v336 = vunpack.c.h.b16 %v241
    %v337 = vunpack.c.l.b16 %v242
    %v338 = vunpack.c.h.b16 %v242
    %v339 = vunpack.c.l.b16 %v243
    %v340 = vunpack.c.h.b16 %v243
    %v341 = vunpack.c.l.b16 %v244
    %v342 = vunpack.c.h.b16 %v244
    %v343 = vunpack.c.l.b16 %v245
    %v344 = vunpack.c.h.b16 %v245
    %v345 = vunpack.c.l.b16 %v246
    %v346 = vunpack.c.h.b16 %v246
    %v347 = vunpack.c.l.b16 %v247
    %v348 = vunpack.c.h.b16 %v247
    %v349 = vunpack.c.l.b16 %v248
    %v350 = vunpack.c.h.b16 %v248
    %v351 = vunpack.c.l.b16 %v249
    %v352 = vunpack.c.h.b16 %v249
    %v353 = vunpack.c.l.b16 %v250
    %v354 = vunpack.c.h.b16 %v250
    %v355 = vunpack.c.l.b16 %v251
    %v356 = vunpack.c.h.b16 %v251
    %v357 = vunpack.c.l.b16 %v252
    %v358 = vunpack.c.h.b16 %v252
    %v359 = vunpack.c.l.b16 %v253
    %v360 = vunpack.c.h.b16 %v253
    %v361 = vunpack.c.l.b16 %v254
    %v362 = vunpack.c.h.b16 %v254
    %v363 = vpack.c.b16 %v301, %v299
    %v364 = vpack.c.b16 %v302, %v300
    %v365 = vpack.c.b16 %v305, %v303
    %v366 = vpack.c.b16 %v306, %v304
    %v367 = vpack.c.b16 %v309, %v307
    %v368 = vpack.c.b16 %v310, %v308
    %v369 = vpack.c.b16 %v313, %v311
    %v370 = vpack.c.b16 %v314, %v312
    %v371 = vpack.c.b16 %v317, %v315
    %v372 = vpack.c.b16 %v318, %v316
    %v373 = vpack.c.b16 %v321, %v319
    %v374 = vpack.c.b16 %v322, %v320
    %v375 = vpack.c.b16 %v325, %v323
    %v376 = vpack.c.b16 %v326, %v324
    %v377 = vpack.c.b16 %v329, %v327
    %v378 = vpack.c.b16 %v330, %v328
    %v379 = vpack.c.b16 %v333, %v331
    %v380 = vpack.c.b16 %v334, %v332
    %v381 = vpack.c.b16 %v337, %v335
    %v382 = vpack.c.b16 %v338, %v336
    %v383 = vpack.c.b16 %v341, %v339
    %v384 = vpack.c.b16 %v342, %v340
    %v385 = vpack.c.b16 %v345, %v343
    %v386 = vpack.c.b16 %v346, %v344
    %v387 = vpack.c.b16 %v349, %v347
    %v388 = vpack.c.b16 %v350, %v348
    %v389 = vpack.c.b16 %v353, %v351
    %v390 = vpack.c.b16 %v354, %v352
    %v391 = vpack.c.b16 %v357, %v355
    %v392 = vpack.c.b16 %v358, %v356
    %v393 = vpack.c.b16 %v361, %v359
    %v394 = vpack.c.b16 %v362, %v360
    %427 = vmatprep.subr.bf16.mxu0 %v364
    %428 = vmatpush1.bf16.msra.mxu0 %v363
    %429 = vmatprep.subr.bf16.mxu0 %v366
    %430 = vmatpush1.bf16.msra.mxu0 %v365
    %431 = vmatprep.subr.bf16.mxu0 %v368
    %432 = vmatpush1.bf16.msra.mxu0 %v367
    %433 = vmatprep.subr.bf16.mxu0 %v370
    %434 = vmatpush1.bf16.msra.mxu0 %v369
    %435 = vmatprep.subr.bf16.mxu0 %v372
    %436 = vmatpush1.bf16.msra.mxu0 %v371
    %437 = vmatprep.subr.bf16.mxu0 %v374
    %438 = vmatpush1.bf16.msra.mxu0 %v373
    %439 = vmatprep.subr.bf16.mxu0 %v376
    %440 = vmatpush1.bf16.msra.mxu0 %v375
    %441 = vmatprep.subr.bf16.mxu0 %v378
    %442 = vmatpush1.bf16.msra.mxu0 %v377
    %443 = vmatprep.subr.bf16.mxu0 %v380
    %444 = vmatpush1.bf16.msra.mxu0 %v379
    %445 = vmatprep.subr.bf16.mxu0 %v382
    %446 = vmatpush1.bf16.msra.mxu0 %v381
    %447 = vmatprep.subr.bf16.mxu0 %v384
    %448 = vmatpush1.bf16.msra.mxu0 %v383
    %449 = vmatprep.subr.bf16.mxu0 %v386
    %450 = vmatpush1.bf16.msra.mxu0 %v385
    %451 = vmatprep.subr.bf16.mxu0 %v388
    %452 = vmatpush1.bf16.msra.mxu0 %v387
    %453 = vmatprep.subr.bf16.mxu0 %v390
    %454 = vmatpush1.bf16.msra.mxu0 %v389
    %455 = vmatprep.subr.bf16.mxu0 %v392
    %456 = vmatpush1.bf16.msra.mxu0 %v391
    %457 = vmatprep.subr.bf16.mxu0 %v394
    %458 = vmatpush1.bf16.msra.mxu0 %v393
    %459 = vmatprep.mubr.bf16.mxu0 %v216
    %460 = vmatmul.mubr.bf16.gmra.mrb[0].mxu0 %v215
    %v461 = vpop.f32.mrb[0].mxu0
    %v462 = vadd.f32 %v260, %v461
    %v463 = vpop.f32.mrb[0].mxu0
    %v464 = vadd.f32 %v264, %v463
    %v465 = vpop.f32.mrb[0].mxu0
    %v466 = vadd.f32 %v260, %v465
    %v467 = vpop.f32.mrb[0].mxu0
    %v468 = vadd.f32 %v264, %v467
    %469 = vmatprep.mubr.bf16.mxu0 %v218
    %470 = vmatmul.mubr.bf16.gmra.mrb[0].mxu0 %v217
    %v471 = vpop.f32.mrb[0].mxu0
    %v472 = vadd.f32 %v260, %v471
    %v473 = vpop.f32.mrb[0].mxu0
    %v474 = vadd.f32 %v264, %v473
    %v475 = vpop.f32.mrb[0].mxu0
    %v476 = vadd.f32 %v260, %v475
    %v477 = vpop.f32.mrb[0].mxu0
    %v478 = vadd.f32 %v264, %v477
    %479 = vmatprep.mubr.bf16.mxu0 %v220
    %480 = vmatmul.mubr.bf16.gmra.mrb[0].mxu0 %v219
    %v481 = vpop.f32.mrb[0].mxu0
    %v482 = vadd.f32 %v260, %v481
    %v483 = vpop.f32.mrb[0].mxu0
    %v484 = vadd.f32 %v264, %v483
    %v485 = vpop.f32.mrb[0].mxu0
    %v486 = vadd.f32 %v260, %v485
    %v487 = vpop.f32.mrb[0].mxu0
    %v488 = vadd.f32 %v264, %v487
    %489 = vmatprep.mubr.bf16.mxu0 %v222
    %490 = vmatmul.mubr.bf16.gmra.mrb[0].mxu0 %v221
    %v491 = vpop.f32.mrb[0].mxu0
    %v492 = vadd.f32 %v260, %v491
    %v493 = vpop.f32.mrb[0].mxu0
    %v494 = vadd.f32 %v264, %v493
    %v495 = vpop.f32.mrb[0].mxu0
    %v496 = vadd.f32 %v260, %v495
    %v497 = vpop.f32.mrb[0].mxu0
    %v498 = vadd.f32 %v264, %v497
    %499 = vdwg.mxu0
    %v500 = vmax.f32 %v462, 0.0
    %v501 = vmax.f32 %v464, 0.0
    %v502 = vmax.f32 %v466, 0.0
    %v503 = vmax.f32 %v468, 0.0
    %v504 = vmax.f32 %v472, 0.0
    %v505 = vmax.f32 %v474, 0.0
    %v506 = vmax.f32 %v476, 0.0
    %v507 = vmax.f32 %v478, 0.0
    %v508 = vmax.f32 %v482, 0.0
    %v509 = vmax.f32 %v484, 0.0
    %v510 = vmax.f32 %v486, 0.0
    %v511 = vmax.f32 %v488, 0.0
    %v512 = vmax.f32 %v492, 0.0
    %v513 = vmax.f32 %v494, 0.0
    %v514 = vmax.f32 %v496, 0.0
    %v515 = vmax.f32 %v498, 0.0
    %v516 = vpack.c.bf16 %v502, %v500
    %v517 = vpack.c.bf16 %v503, %v501
    %v518 = vpack.c.bf16 %v506, %v504
    %v519 = vpack.c.bf16 %v507, %v505
    %v520 = vpack.c.bf16 %v510, %v508
    %v521 = vpack.c.bf16 %v511, %v509
    %v522 = vpack.c.bf16 %v514, %v512
    %v523 = vpack.c.bf16 %v515, %v513
    %v524 = vld [vmem:[#allocation4] sm:$0xff]
    %v525 = vld [vmem:[#allocation4 + $0x8] sm:$0xff]
    %v526 = vld [vmem:[#allocation4 + $0x10] sm:$0xff]
    %v527 = vld [vmem:[#allocation4 + $0x18] sm:$0xff]
    %v528 = vld [vmem:[#allocation4 + $0x20] sm:$0xff]
    %v529 = vld [vmem:[#allocation4 + $0x28] sm:$0xff]
    %v530 = vld [vmem:[#allocation4 + $0x30] sm:$0xff]
    %v531 = vld [vmem:[#allocation4 + $0x38] sm:$0xff]
    %v532 = vld [vmem:[#allocation4 + $0x40] sm:$0xff]
    %v533 = vld [vmem:[#allocation4 + $0x48] sm:$0xff]
    %v534 = vld [vmem:[#allocation4 + $0x50] sm:$0xff]
    %v535 = vld [vmem:[#allocation4 + $0x58] sm:$0xff]
    %v536 = vld [vmem:[#allocation4 + $0x60] sm:$0xff]
    %v537 = vld [vmem:[#allocation4 + $0x68] sm:$0xff]
    %v538 = vld [vmem:[#allocation4 + $0x70] sm:$0xff]
    %v539 = vld [vmem:[#allocation4 + $0x78] sm:$0xff]
    %v540 = vld [vmem:[#allocation4 + $0x80] sm:$0xff]
    %v541 = vld [vmem:[#allocation4 + $0x88] sm:$0xff]
    %v542 = vld [vmem:[#allocation4 + $0x90] sm:$0xff]
    %v543 = vld [vmem:[#allocation4 + $0x98] sm:$0xff]
    %v544 = vld [vmem:[#allocation4 + $0xa0] sm:$0xff]
    %v545 = vld [vmem:[#allocation4 + $0xa8] sm:$0xff]
    %v546 = vld [vmem:[#allocation4 + $0xb0] sm:$0xff]
    %v547 = vld [vmem:[#allocation4 + $0xb8] sm:$0xff]
    %v548 = vld [vmem:[#allocation4 + $0xc0] sm:$0xff]
    %v549 = vld [vmem:[#allocation4 + $0xc8] sm:$0xff]
    %v550 = vld [vmem:[#allocation4 + $0xd0] sm:$0xff]
    %v551 = vld [vmem:[#allocation4 + $0xd8] sm:$0xff]
    %v552 = vld [vmem:[#allocation4 + $0xe0] sm:$0xff]
    %v553 = vld [vmem:[#allocation4 + $0xe8] sm:$0xff]
    %v554 = vld [vmem:[#allocation4 + $0xf0] sm:$0xff]
    %v555 = vld [vmem:[#allocation4 + $0xf8] sm:$0xff]
    %v556 = vld [vmem:[%s6] sm:$0x3]
    %v558 = vlaneseq
    %v559 = vshrl.u32 %v558, 7
    %v560 = vsub.s32 0, %v559
    %v561 = vrot.slane %v556, %v560
    %v562 = vlaneseq
    %v563 = vshrl.u32 %v562, 7
    %v564 = vsub.s32 1, %v563
    %v565 = vrot.slane %v556, %v564
    %v600 = vunpack.c.l.b16 %v524
    %v601 = vunpack.c.h.b16 %v524
    %v602 = vunpack.c.l.b16 %v525
    %v603 = vunpack.c.h.b16 %v525
    %v604 = vunpack.c.l.b16 %v526
    %v605 = vunpack.c.h.b16 %v526
    %v606 = vunpack.c.l.b16 %v527
    %v607 = vunpack.c.h.b16 %v527
    %v608 = vunpack.c.l.b16 %v528
    %v609 = vunpack.c.h.b16 %v528
    %v610 = vunpack.c.l.b16 %v529
    %v611 = vunpack.c.h.b16 %v529
    %v612 = vunpack.c.l.b16 %v530
    %v613 = vunpack.c.h.b16 %v530
    %v614 = vunpack.c.l.b16 %v531
    %v615 = vunpack.c.h.b16 %v531
    %v616 = vunpack.c.l.b16 %v532
    %v617 = vunpack.c.h.b16 %v532
    %v618 = vunpack.c.l.b16 %v533
    %v619 = vunpack.c.h.b16 %v533
    %v620 = vunpack.c.l.b16 %v534
    %v621 = vunpack.c.h.b16 %v534
    %v622 = vunpack.c.l.b16 %v535
    %v623 = vunpack.c.h.b16 %v535
    %v624 = vunpack.c.l.b16 %v536
    %v625 = vunpack.c.h.b16 %v536
    %v626 = vunpack.c.l.b16 %v537
    %v627 = vunpack.c.h.b16 %v537
    %v628 = vunpack.c.l.b16 %v538
    %v629 = vunpack.c.h.b16 %v538
    %v630 = vunpack.c.l.b16 %v539
    %v631 = vunpack.c.h.b16 %v539
    %v632 = vunpack.c.l.b16 %v540
    %v633 = vunpack.c.h.b16 %v540
    %v634 = vunpack.c.l.b16 %v541
    %v635 = vunpack.c.h.b16 %v541
    %v636 = vunpack.c.l.b16 %v542
    %v637 = vunpack.c.h.b16 %v542
    %v638 = vunpack.c.l.b16 %v543
    %v639 = vunpack.c.h.b16 %v543
    %v640 = vunpack.c.l.b16 %v544
    %v641 = vunpack.c.h.b16 %v544
    %v642 = vunpack.c.l.b16 %v545
    %v643 = vunpack.c.h.b16 %v545
    %v644 = vunpack.c.l.b16 %v546
    %v645 = vunpack.c.h.b16 %v546
    %v646 = vunpack.c.l.b16 %v547
    %v647 = vunpack.c.h.b16 %v547
    %v648 = vunpack.c.l.b16 %v548
    %v649 = vunpack.c.h.b16 %v548
    %v650 = vunpack.c.l.b16 %v549
    %v651 = vunpack.c.h.b16 %v549
    %v652 = vunpack.c.l.b16 %v550
    %v653 = vunpack.c.h.b16 %v550
    %v654 = vunpack.c.l.b16 %v551
    %v655 = vunpack.c.h.b16 %v551
    %v656 = vunpack.c.l.b16 %v552
    %v657 = vunpack.c.h.b16 %v552
    %v658 = vunpack.c.l.b16 %v553
    %v659 = vunpack.c.h.b16 %v553
    %v660 = vunpack.c.l.b16 %v554
    %v661 = vunpack.c.h.b16 %v554
    %v662 = vunpack.c.l.b16 %v555
    %v663 = vunpack.c.h.b16 %v555
    %v664 = vpack.c.b16 %v602, %v600
    %v665 = vpack.c.b16 %v603, %v601
    %v666 = vpack.c.b16 %v606, %v604
    %v667 = vpack.c.b16 %v607, %v605
    %v668 = vpack.c.b16 %v610, %v608
    %v669 = vpack.c.b16 %v611, %v609
    %v670 = vpack.c.b16 %v614, %v612
    %v671 = vpack.c.b16 %v615, %v613
    %v672 = vpack.c.b16 %v618, %v616
    %v673 = vpack.c.b16 %v619, %v617
    %v674 = vpack.c.b16 %v622, %v620
    %v675 = vpack.c.b16 %v623, %v621
    %v676 = vpack.c.b16 %v626, %v624
    %v677 = vpack.c.b16 %v627, %v625
    %v678 = vpack.c.b16 %v630, %v628
    %v679 = vpack.c.b16 %v631, %v629
    %v680 = vpack.c.b16 %v634, %v632
    %v681 = vpack.c.b16 %v635, %v633
    %v682 = vpack.c.b16 %v638, %v636
    %v683 = vpack.c.b16 %v639, %v637
    %v684 = vpack.c.b16 %v642, %v640
    %v685 = vpack.c.b16 %v643, %v641
    %v686 = vpack.c.b16 %v646, %v644
    %v687 = vpack.c.b16 %v647, %v645
    %v688 = vpack.c.b16 %v650, %v648
    %v689 = vpack.c.b16 %v651, %v649
    %v690 = vpack.c.b16 %v654, %v652
    %v691 = vpack.c.b16 %v655, %v653
    %v692 = vpack.c.b16 %v658, %v656
    %v693 = vpack.c.b16 %v659, %v657
    %v694 = vpack.c.b16 %v662, %v660
    %v695 = vpack.c.b16 %v663, %v661
    %728 = vmatprep.subr.bf16.mxu0 %v665
    %729 = vmatpush1.bf16.msra.mxu0 %v664
    %730 = vmatprep.subr.bf16.mxu0 %v667
    %731 = vmatpush1.bf16.msra.mxu0 %v666
    %732 = vmatprep.subr.bf16.mxu0 %v669
    %733 = vmatpush1.bf16.msra.mxu0 %v668
    %734 = vmatprep.subr.bf16.mxu0 %v671
    %735 = vmatpush1.bf16.msra.mxu0 %v670
    %736 = vmatprep.subr.bf16.mxu0 %v673
    %737 = vmatpush1.bf16.msra.mxu0 %v672
    %738 = vmatprep.subr.bf16.mxu0 %v675
    %739 = vmatpush1.bf16.msra.mxu0 %v674
    %740 = vmatprep.subr.bf16.mxu0 %v677
    %741 = vmatpush1.bf16.msra.mxu0 %v676
    %742 = vmatprep.subr.bf16.mxu0 %v679
    %743 = vmatpush1.bf16.msra.mxu0 %v678
    %744 = vmatprep.subr.bf16.mxu0 %v681
    %745 = vmatpush1.bf16.msra.mxu0 %v680
    %746 = vmatprep.subr.bf16.mxu0 %v683
    %747 = vmatpush1.bf16.msra.mxu0 %v682
    %748 = vmatprep.subr.bf16.mxu0 %v685
    %749 = vmatpush1.bf16.msra.mxu0 %v684
    %750 = vmatprep.subr.bf16.mxu0 %v687
    %751 = vmatpush1.bf16.msra.mxu0 %v686
    %752 = vmatprep.subr.bf16.mxu0 %v689
    %753 = vmatpush1.bf16.msra.mxu0 %v688
    %754 = vmatprep.subr.bf16.mxu0 %v691
    %755 = vmatpush1.bf16.msra.mxu0 %v690
    %756 = vmatprep.subr.bf16.mxu0 %v693
    %757 = vmatpush1.bf16.msra.mxu0 %v692
    %758 = vmatprep.subr.bf16.mxu0 %v695
    %759 = vmatpush1.bf16.msra.mxu0 %v694
    %760 = vmatprep.mubr.bf16.mxu0 %v517
    %761 = vmatmul.mubr.bf16.gmra.mrb[0].mxu0 %v516
    %v762 = vpop.f32.mrb[0].mxu0
    %v763 = vadd.f32 %v561, %v762
    %v764 = vpop.f32.mrb[0].mxu0
    %v765 = vadd.f32 %v565, %v764
    %v766 = vpop.f32.mrb[0].mxu0
    %v767 = vadd.f32 %v561, %v766
    %v768 = vpop.f32.mrb[0].mxu0
    %v769 = vadd.f32 %v565, %v768
    %770 = vmatprep.mubr.bf16.mxu0 %v519
    %771 = vmatmul.mubr.bf16.gmra.mrb[0].mxu0 %v518
    %v772 = vpop.f32.mrb[0].mxu0
    %v773 = vadd.f32 %v561, %v772
    %v774 = vpop.f32.mrb[0].mxu0
    %v775 = vadd.f32 %v565, %v774
    %v776 = vpop.f32.mrb[0].mxu0
    %v777 = vadd.f32 %v561, %v776
    %v778 = vpop.f32.mrb[0].mxu0
    %v779 = vadd.f32 %v565, %v778
    %780 = vmatprep.mubr.bf16.mxu0 %v521
    %781 = vmatmul.mubr.bf16.gmra.mrb[0].mxu0 %v520
    %v782 = vpop.f32.mrb[0].mxu0
    %v783 = vadd.f32 %v561, %v782
    %v784 = vpop.f32.mrb[0].mxu0
    %v785 = vadd.f32 %v565, %v784
    %v786 = vpop.f32.mrb[0].mxu0
    %v787 = vadd.f32 %v561, %v786
    %v788 = vpop.f32.mrb[0].mxu0
    %v789 = vadd.f32 %v565, %v788
    %790 = vmatprep.mubr.bf16.mxu0 %v523
    %791 = vmatmul.mubr.bf16.gmra.mrb[0].mxu0 %v522
    %v792 = vpop.f32.mrb[0].mxu0
    %v793 = vadd.f32 %v561, %v792
    %v794 = vpop.f32.mrb[0].mxu0
    %v795 = vadd.f32 %v565, %v794
    %v796 = vpop.f32.mrb[0].mxu0
    %v797 = vadd.f32 %v561, %v796
    %v798 = vpop.f32.mrb[0].mxu0
    %v799 = vadd.f32 %v565, %v798
    %800 = vdwg.mxu0
    %v801 = vmax.f32 %v763, 0.0
    %v802 = vmax.f32 %v765, 0.0
    %v803 = vmax.f32 %v767, 0.0
    %v804 = vmax.f32 %v769, 0.0
    %v805 = vmax.f32 %v773, 0.0
    %v806 = vmax.f32 %v775, 0.0
    %v807 = vmax.f32 %v777, 0.0
    %v808 = vmax.f32 %v779, 0.0
    %v809 = vmax.f32 %v783, 0.0
    %v810 = vmax.f32 %v785, 0.0
    %v811 = vmax.f32 %v787, 0.0
    %v812 = vmax.f32 %v789, 0.0
    %v813 = vmax.f32 %v793, 0.0
    %v814 = vmax.f32 %v795, 0.0
    %v815 = vmax.f32 %v797, 0.0
    %v816 = vmax.f32 %v799, 0.0
    %v817 = vpack.c.bf16 %v803, %v801
    %v818 = vpack.c.bf16 %v804, %v802
    %v819 = vpack.c.bf16 %v807, %v805
    %v820 = vpack.c.bf16 %v808, %v806
    %v821 = vpack.c.bf16 %v811, %v809
    %v822 = vpack.c.bf16 %v812, %v810
    %v823 = vpack.c.bf16 %v815, %v813
    %v824 = vpack.c.bf16 %v816, %v814
    %v825 = vld [vmem:[%s7] sm:$0xf]
    %v826 = vld [vmem:[%s7 + $0x4] sm:$0xf]
    %v827 = vld [vmem:[%s7 + $0x8] sm:$0xf]
    %v828 = vld [vmem:[%s7 + $0xc] sm:$0xf]
    %v829 = vld [vmem:[%s7 + $0x10] sm:$0xf]
    %v830 = vld [vmem:[%s7 + $0x14] sm:$0xf]
    %v831 = vld [vmem:[%s7 + $0x18] sm:$0xf]
    %v832 = vld [vmem:[%s7 + $0x1c] sm:$0xf]
    %v833 = vld [vmem:[%s7 + $0x20] sm:$0xf]
    %v834 = vld [vmem:[%s7 + $0x24] sm:$0xf]
    %v835 = vld [vmem:[%s7 + $0x28] sm:$0xf]
    %v836 = vld [vmem:[%s7 + $0x2c] sm:$0xf]
    %v837 = vld [vmem:[%s7 + $0x30] sm:$0xf]
    %v838 = vld [vmem:[%s7 + $0x34] sm:$0xf]
    %v839 = vld [vmem:[%s7 + $0x38] sm:$0xf]
    %v840 = vld [vmem:[%s7 + $0x3c] sm:$0xf]
    %v841 = vld [vmem:[%s7 + $0x40] sm:$0xf]
    %v842 = vld [vmem:[%s7 + $0x44] sm:$0xf]
    %v843 = vld [vmem:[%s7 + $0x48] sm:$0xf]
    %v844 = vld [vmem:[%s7 + $0x4c] sm:$0xf]
    %v845 = vld [vmem:[%s7 + $0x50] sm:$0xf]
    %v846 = vld [vmem:[%s7 + $0x54] sm:$0xf]
    %v847 = vld [vmem:[%s7 + $0x58] sm:$0xf]
    %v848 = vld [vmem:[%s7 + $0x5c] sm:$0xf]
    %v849 = vld [vmem:[%s7 + $0x60] sm:$0xf]
    %v850 = vld [vmem:[%s7 + $0x64] sm:$0xf]
    %v851 = vld [vmem:[%s7 + $0x68] sm:$0xf]
    %v852 = vld [vmem:[%s7 + $0x6c] sm:$0xf]
    %v853 = vld [vmem:[%s7 + $0x70] sm:$0xf]
    %v854 = vld [vmem:[%s7 + $0x74] sm:$0xf]
    %v855 = vld [vmem:[%s7 + $0x78] sm:$0xf]
    %v856 = vld [vmem:[%s7 + $0x7c] sm:$0xf]
    %v857 = vld [vmem:[%s8] sm:$0x1]
    %v859 = vlaneseq
    %v860 = vshrl.u32 %v859, 7
    %v861 = vsub.s32 0, %v860
    %v862 = vrot.slane %v857, %v861
    %v896 = vunpack.c.l.b16 %v825
    %v897 = vunpack.c.l.b16 %v826
    %v898 = vunpack.c.l.b16 %v827
    %v899 = vunpack.c.l.b16 %v828
    %v900 = vunpack.c.l.b16 %v829
    %v901 = vunpack.c.l.b16 %v830
    %v902 = vunpack.c.l.b16 %v831
    %v903 = vunpack.c.l.b16 %v832
    %v904 = vunpack.c.l.b16 %v833
    %v905 = vunpack.c.l.b16 %v834
    %v906 = vunpack.c.l.b16 %v835
    %v907 = vunpack.c.l.b16 %v836
    %v908 = vunpack.c.l.b16 %v837
    %v909 = vunpack.c.l.b16 %v838
    %v910 = vunpack.c.l.b16 %v839
    %v911 = vunpack.c.l.b16 %v840
    %v912 = vunpack.c.l.b16 %v841
    %v913 = vunpack.c.l.b16 %v842
    %v914 = vunpack.c.l.b16 %v843
    %v915 = vunpack.c.l.b16 %v844
    %v916 = vunpack.c.l.b16 %v845
    %v917 = vunpack.c.l.b16 %v846
    %v918 = vunpack.c.l.b16 %v847
    %v919 = vunpack.c.l.b16 %v848
    %v920 = vunpack.c.l.b16 %v849
    %v921 = vunpack.c.l.b16 %v850
    %v922 = vunpack.c.l.b16 %v851
    %v923 = vunpack.c.l.b16 %v852
    %v924 = vunpack.c.l.b16 %v853
    %v925 = vunpack.c.l.b16 %v854
    %v926 = vunpack.c.l.b16 %v855
    %v927 = vunpack.c.l.b16 %v856
    %v928 = vpack.c.b16 %v897, %v896
    %v929 = vpack.c.b16 %v899, %v898
    %v930 = vpack.c.b16 %v901, %v900
    %v931 = vpack.c.b16 %v903, %v902
    %v932 = vpack.c.b16 %v905, %v904
    %v933 = vpack.c.b16 %v907, %v906
    %v934 = vpack.c.b16 %v909, %v908
    %v935 = vpack.c.b16 %v911, %v910
    %v936 = vpack.c.b16 %v913, %v912
    %v937 = vpack.c.b16 %v915, %v914
    %v938 = vpack.c.b16 %v917, %v916
    %v939 = vpack.c.b16 %v919, %v918
    %v940 = vpack.c.b16 %v921, %v920
    %v941 = vpack.c.b16 %v923, %v922
    %v942 = vpack.c.b16 %v925, %v924
    %v943 = vpack.c.b16 %v927, %v926
    %960 = vmatprep.subr.bf16.mxu0 0
    %961 = vmatpush1.bf16.msra.mxu0 %v928
    %962 = vmatprep.subr.bf16.mxu0 0
    %963 = vmatpush1.bf16.msra.mxu0 %v929
    %964 = vmatprep.subr.bf16.mxu0 0
    %965 = vmatpush1.bf16.msra.mxu0 %v930
    %966 = vmatprep.subr.bf16.mxu0 0
    %967 = vmatpush1.bf16.msra.mxu0 %v931
    %968 = vmatprep.subr.bf16.mxu0 0
    %969 = vmatpush1.bf16.msra.mxu0 %v932
    %970 = vmatprep.subr.bf16.mxu0 0
    %971 = vmatpush1.bf16.msra.mxu0 %v933
    %972 = vmatprep.subr.bf16.mxu0 0
    %973 = vmatpush1.bf16.msra.mxu0 %v934
    %974 = vmatprep.subr.bf16.mxu0 0
    %975 = vmatpush1.bf16.msra.mxu0 %v935
    %976 = vmatprep.subr.bf16.mxu0 0
    %977 = vmatpush1.bf16.msra.mxu0 %v936
    %978 = vmatprep.subr.bf16.mxu0 0
    %979 = vmatpush1.bf16.msra.mxu0 %v937
    %980 = vmatprep.subr.bf16.mxu0 0
    %981 = vmatpush1.bf16.msra.mxu0 %v938
    %982 = vmatprep.subr.bf16.mxu0 0
    %983 = vmatpush1.bf16.msra.mxu0 %v939
    %984 = vmatprep.subr.bf16.mxu0 0
    %985 = vmatpush1.bf16.msra.mxu0 %v940
    %986 = vmatprep.subr.bf16.mxu0 0
    %987 = vmatpush1.bf16.msra.mxu0 %v941
    %988 = vmatprep.subr.bf16.mxu0 0
    %989 = vmatpush1.bf16.msra.mxu0 %v942
    %990 = vmatprep.subr.bf16.mxu0 0
    %991 = vmatpush1.bf16.msra.mxu0 %v943
    %992 = vmatprep.mubr.bf16.mxu0 %v818
    %993 = vmatmul.mubr.bf16.gmra.mrb[0].mxu0 %v817
    %v994 = vpop.f32.mrb[0].mxu0
    %v995 = vadd.f32 %v862, %v994
    %v996 = vpop.f32.mrb[0].mxu0
    %v997 = vpop.f32.mrb[0].mxu0
    %v998 = vadd.f32 %v862, %v997
    %v999 = vpop.f32.mrb[0].mxu0
    %1000 = vmatprep.mubr.bf16.mxu0 %v820
    %1001 = vmatmul.mubr.bf16.gmra.mrb[0].mxu0 %v819
    %v1002 = vpop.f32.mrb[0].mxu0
    %v1003 = vadd.f32 %v862, %v1002
    %v1004 = vpop.f32.mrb[0].mxu0
    %v1005 = vpop.f32.mrb[0].mxu0
    %v1006 = vadd.f32 %v862, %v1005
    %v1007 = vpop.f32.mrb[0].mxu0
    %1008 = vmatprep.mubr.bf16.mxu0 %v822
    %1009 = vmatmul.mubr.bf16.gmra.mrb[0].mxu0 %v821
    %v1010 = vpop.f32.mrb[0].mxu0
    %v1011 = vadd.f32 %v862, %v1010
    %v1012 = vpop.f32.mrb[0].mxu0
    %v1013 = vpop.f32.mrb[0].mxu0
    %v1014 = vadd.f32 %v862, %v1013
    %v1015 = vpop.f32.mrb[0].mxu0
    %1016 = vmatprep.mubr.bf16.mxu0 %v824
    %1017 = vmatmul.mubr.bf16.gmra.mrb[0].mxu0 %v823
    %v1018 = vpop.f32.mrb[0].mxu0
    %v1019 = vadd.f32 %v862, %v1018
    %v1020 = vpop.f32.mrb[0].mxu0
    %v1021 = vpop.f32.mrb[0].mxu0
    %v1022 = vadd.f32 %v862, %v1021
    %v1023 = vpop.f32.mrb[0].mxu0
    %1024 = vdwg.mxu0
    %v1025 = vpack.c.bf16 %v998, %v995
    %v1026 = vpack.c.bf16 %v1006, %v1003
    %v1027 = vpack.c.bf16 %v1014, %v1011
    %v1028 = vpack.c.bf16 %v1022, %v1019
    %v1033 = vunpack.c.l.b16 %v1025
    %v1034 = vunpack.c.h.b16 %v1025
    %v1035 = vunpack.c.l.b16 %v1026
    %v1036 = vunpack.c.h.b16 %v1026
    %v1037 = vunpack.c.l.b16 %v1027
    %v1038 = vunpack.c.h.b16 %v1027
    %v1039 = vunpack.c.l.b16 %v1028
    %v1040 = vunpack.c.h.b16 %v1028
    %v1041 = vpack.c.b16 %v1033, %v1033
    %v1042 = vpack.c.b16 %v1034, %v1034
    %v1043 = vpack.c.b16 %v1035, %v1035
    %v1044 = vpack.c.b16 %v1036, %v1036
    %v1045 = vpack.c.b16 %v1037, %v1037
    %v1046 = vpack.c.b16 %v1038, %v1038
    %v1047 = vpack.c.b16 %v1039, %v1039
    %v1048 = vpack.c.b16 %v1040, %v1040
    %1057 = vst [vmem:[%s9] sm:$0xf] %v1041
    %1058 = vst [vmem:[%s9 + $0x4] sm:$0xf] %v1042
    %1059 = vst [vmem:[%s9 + $0x8] sm:$0xf] %v1043
    %1060 = vst [vmem:[%s9 + $0xc] sm:$0xf] %v1044
    %1061 = vst [vmem:[%s9 + $0x10] sm:$0xf] %v1045
    %1062 = vst [vmem:[%s9 + $0x14] sm:$0xf] %v1046
    %1063 = vst [vmem:[%s9 + $0x18] sm:$0xf] %v1047
    %1064 = vst [vmem:[%s9 + $0x1c] sm:$0xf] %v1048
    // Predicated region
    $region46: #{_dqn_forward_padded.1} parent=1 // pred_check
      _
    $region47: #{_dqn_forward_padded.1} parent=1 // pred_check_branch
      %1066 = sbr.rel (0) target = $region49
    $region48: #{_dqn_forward_padded.1} parent=1 // pred_region
      _
    $region49: #{_dqn_forward_padded.1} parent=1 // pred_fallthru
      _
    // Predicated region
    $region50: #{_dqn_forward_padded.1} parent=1 // pred_check
      _
    $region51: #{_dqn_forward_padded.1} parent=1 // pred_check_branch
      %1068 = sbr.rel (0) target = $region53
    $region52: #{_dqn_forward_padded.1} parent=1 // pred_region
      _
    $region53: #{_dqn_forward_padded.1} parent=1 // pred_fallthru
      _
    %1069 = vsyncpa [#allocation3], 1
    %1070 = vsyncpa [#allocation5], 1

</llo_original>
